<compile_context>
chip_gen: v6e
topology: v6e:2x2x1
jax: 0.10.0
libtpu: 0.0.40
codegen_flags: <defaults>
</compile_context>

<pallas_src>
import numpy as np
import jax
import jax.numpy as jnp
from jax.experimental import pallas as pl
from jax.experimental.pallas import tpu as pltpu


def build_pe_table(d_model: int, max_len: int = 5000) -> jnp.ndarray:
    """Sinusoidal positional-encoding buffer, identical to the PyTorch __init__
    (float32, shape (max_len, d_model))."""
    position = np.arange(0, max_len, dtype=np.float32)[:, None]             # (L, 1)
    div_term = np.exp(np.arange(0, d_model, 2, dtype=np.float32)
                      * (-np.log(10000.0) / d_model))                        # (d/2,)
    pe = np.zeros((max_len, d_model), dtype=np.float32)
    pe[:, 0::2] = np.sin(position * div_term)
    pe[:, 1::2] = np.cos(position * div_term)
    return jnp.asarray(pe)


# Tiling targets: ~1 MiB (f32) per block buffer, lane-dense (multiple-of-128) columns.
_COL_TILE_TARGET = 4096          # columns per block (16 KiB/row in f32)
_BLOCK_ELEMS_TARGET = 1 << 18    # ~256K elements ~= 1 MiB f32 per block buffer
_VMEM_BUDGET_BYTES = 24 * 1024 * 1024   # safety cap for the chosen tiling


def _pick_tile(dim: int, unit: int, target: int) -> int:
    """Largest t <= target with t % unit == 0 and dim % t == 0; else the full dim.

    A block dim must be a multiple of the hardware unit (8 sublane / 128 lane)
    OR equal to the full array dim; only evenly-dividing tiles are used so no
    boundary masking is ever needed."""
    if dim <= target:
        return dim
    t = (max(target, unit) // unit) * unit
    while t >= unit:
        if dim % t == 0:
            return t
        t -= unit
    return dim  # no aligned divisor found: fall back to the full axis


def _pe_add_kernel(x_ref, pe_ref, o_ref):
    # x_ref: (tb, tc), pe_ref: (1, tc), o_ref: (tb, tc).
    # Implicit broadcast of pe over the batch-row axis; astype is a no-op when
    # x already has the output dtype (the common f32 case).
    o_ref[...] = x_ref[...].astype(o_ref.dtype) + pe_ref[...]


def positional_encoding(x: jnp.ndarray, pe_table: jnp.ndarray) -> jnp.ndarray:
    """Forward pass of PositionalEncoding: x + pe[:T][None]; dropout(p=0) = id."""
    B, T, D = x.shape
    max_len = pe_table.shape[0]
    if T > max_len:
        raise ValueError(f"sequence length {T} exceeds max_len {max_len} of pe table")

    # Match PyTorch type promotion (e.g. bf16 x + f32 pe -> f32 output).
    out_dtype = jnp.promote_types(x.dtype, pe_table.dtype)
    pe_slice = pe_table[:T, :].astype(out_dtype)          # tiny one-time cast

    # Flatten (T, D) -> T*D: layout-preserving reshape; makes the last block
    # dim lane-dense even when d_model < 128.
    C = T * D
    tc = _pick_tile(C, 128, _COL_TILE_TARGET)
    tb = _pick_tile(B, 8, max(1, _BLOCK_ELEMS_TARGET // tc))

    # VMEM footprint with default double-buffering:
    #   2 * (x block + out block) + 2 * pe block   (all in out_dtype)
    bpe = jnp.dtype(out_dtype).itemsize
    vmem_needed = (4 * tb * tc + 2 * tc) * bpe
    if vmem_needed > _VMEM_BUDGET_BYTES:
        # Pathological shape (no aligned divisor found): plain XLA add is just
        # as bandwidth-bound and always safe.
        return x.astype(out_dtype) + pe_slice[None, :, :]

    x2 = x.reshape(B, C)
    pe2 = pe_slice.reshape(1, C)
    grid = (C // tc, B // tb)   # batch-row axis innermost -> pe tile stays resident

    out2 = pl.pallas_call(
        _pe_add_kernel,
        out_shape=jax.ShapeDtypeStruct((B, C), out_dtype),
        grid_spec=pltpu.PrefetchScalarGridSpec(
            num_scalar_prefetch=0,
            grid=grid,
            in_specs=[
                pl.BlockSpec((tb, tc), lambda c, r: (r, c)),   # x stream
                pl.BlockSpec((1, tc), lambda c, r: (0, c)),    # pe: constant along batch axis
            ],
            out_specs=pl.BlockSpec((tb, tc), lambda c, r: (r, c)),
        ),
        compiler_params=pltpu.CompilerParams(
            dimension_semantics=("parallel", "parallel"),
            vmem_limit_bytes=32 * 1024 * 1024,
        ),
    )(x2, pe2)

    return out2.reshape(B, T, D)


if __name__ == "__main__":
    # Small shapes consistent with the module: batch=2, seq=8, d_model=32.
    B, T, D = 2, 8, 32
    key = jax.random.PRNGKey(0)
    x = jax.random.normal(key, (B, T, D), dtype=jnp.float32)
    pe_table = build_pe_table(d_model=D, max_len=5000)

    out = jax.block_until_ready(positional_encoding(x, pe_table))
    ref = x + pe_table[:T, :][None, :, :]
    np.testing.assert_allclose(np.asarray(out), np.asarray(ref), rtol=1e-6, atol=1e-6)

    # A second (still small) shape that exercises the tiled, multi-block
    # pipelined path (grid has >1 column block).
    B2, T2, D2 = 4, 64, 128
    x_big = jax.random.normal(jax.random.PRNGKey(0), (B2, T2, D2), dtype=jnp.float32)
    pe_big = build_pe_table(d_model=D2, max_len=5000)
    out_big = jax.block_until_ready(positional_encoding(x_big, pe_big))
    ref_big = x_big + pe_big[:T2, :][None, :, :]
    np.testing.assert_allclose(np.asarray(out_big), np.asarray(ref_big),
                               rtol=1e-6, atol=1e-6)

    print("KERNEL_OK")
</pallas_src>

<mosaic_0001>
module attributes {stable_mosaic.version = 11 : i64} {
  func.func @_pe_add_kernel(%arg0: i32, %arg1: i32, %arg2: memref<2x256xf32, #tpu.memory_space<vmem>>, %arg3: memref<1x256xf32, #tpu.memory_space<vmem>>, %arg4: memref<2x256xf32, #tpu.memory_space<vmem>>) attributes {dimension_semantics = [#tpu.dimension_semantics<parallel>, #tpu.dimension_semantics<parallel>], iteration_bounds = array<i64: 1, 1>, scalar_prefetch = 0 : i64, scratch_operands = 0 : i64, tpu.core_type = #tpu.core_type<tc>, window_params = [{transform_indices = @transform_0, window_bounds = array<i64: 2, 256>}, {transform_indices = @transform_1, window_bounds = array<i64: 1, 256>}, {transform_indices = @transform_2, window_bounds = array<i64: 2, 256>}]} {
    %c0 = arith.constant 0 : index
    %c0_0 = arith.constant 0 : index
    %0 = vector.load %arg2[%c0, %c0_0] : memref<2x256xf32, #tpu.memory_space<vmem>>, vector<2x256xf32>
    %c0_1 = arith.constant 0 : index
    %c0_2 = arith.constant 0 : index
    %1 = vector.load %arg3[%c0_1, %c0_2] : memref<1x256xf32, #tpu.memory_space<vmem>>, vector<1x256xf32>
    %2 = vector.broadcast %1 : vector<1x256xf32> to vector<2x256xf32>
    %3 = arith.addf %0, %2 : vector<2x256xf32>
    %c0_3 = arith.constant 0 : index
    %c0_4 = arith.constant 0 : index
    %4 = vector.load %arg4[%c0_3, %c0_4] : memref<2x256xf32, #tpu.memory_space<vmem>>, vector<2x256xf32>
    tpu.vector_store %arg4[%c0_3, %c0_4], %3 {strides = array<i32>} : memref<2x256xf32, #tpu.memory_space<vmem>>, vector<2x256xf32>,
    return
  }
  func.func @transform_0(%arg0: i32, %arg1: i32) -> (i32, i32) {
    %c0_i32 = arith.constant 0 : i32
    return %arg1, %arg0 : i32, i32
  }
  func.func @transform_1(%arg0: i32, %arg1: i32) -> (i32, i32) {
    %c0_i32 = arith.constant 0 : i32
    %c0_i32_0 = arith.constant 0 : i32
    return %c0_i32, %arg0 : i32, i32
  }
  func.func @transform_2(%arg0: i32, %arg1: i32) -> (i32, i32) {
    %c0_i32 = arith.constant 0 : i32
    return %arg1, %arg0 : i32, i32
  }
}

</mosaic_0001>

<llo_original>
// kernel: tpu_custom_call.1
$region0: #{tpu_custom_call.1}
  #allocation0 [shape = 'u32[]', space=smem, size = 0x4, offset = 0x4, fixed_abs, tag = 'smem constant byte address 0x4 - core index']
  #allocation1 [shape = 'u32[144,128]{1,0:T(1,128)}', space=vmem, size = 0x12000, scoped, tag = 'internal scratch']
  %s0 = inlined_call_operand.hbm [shape: f32[2,256], index: 0, kind: input, shape index: {}]
  %s1 = inlined_call_operand.hbm [shape: f32[1,256], index: 1, kind: input, shape index: {}]
  %s2 = inlined_call_operand.hbm [shape: f32[2,256], index: 2, kind: output, shape index: {}]
  %s3 = sld [smem:[#allocation0]]
  $region26: #{tpu_custom_call.1} parent=0
    _
  %s5 = ssub.s32 1, %s3
  %s6 = scalar_select 0, %s5, %s3
  $region1: #{tpu_custom_call.1} parent=0
    #allocation2 [shape = 'u8[2048]{0}', space=vmem, size = 0x800, scoped, tag = 'input window, operand 0, single buffered']
    #allocation3 [shape = 's32[1]{0}', space=sflag, size = 0x4, scoped, tag = 'scoped memory for tpu_custom_call.1']
    #allocation4 [shape = 's32[1]{0}', space=sflag, size = 0x4, scoped, tag = 'scoped memory for tpu_custom_call.1']
    #allocation5 [shape = 'u8[1024]{0}', space=vmem, size = 0x400, scoped, tag = 'input window, operand 1, single buffered']
    #allocation6 [shape = 's32[1]{0}', space=sflag, size = 0x4, scoped, tag = 'scoped memory for tpu_custom_call.1']
    #allocation7 [shape = 'u8[2048]{0}', space=vmem, size = 0x800, scoped, tag = 'output window, operand 0, single buffered']
    %7 = vsyncpa [#allocation3], 0
    %8 = vsyncpa [#allocation6], 0
    %9 = vsyncpa [#allocation4], 0
    // Predicated region
    $region2: #{tpu_custom_call.1} parent=1 // pred_check
      _
    $region3: #{tpu_custom_call.1} parent=1 // pred_check_branch
      %11 = sbr.rel (0) target = $region5
    $region4: #{tpu_custom_call.1} parent=1 // pred_region
      %s13 = ssub.s32 64, 64
      %14 = vsyncadd [#allocation3], %s13
      %s16 = sshll.u32 [#allocation2], 4
      %s17 = int_to_ptr.vmem [resolvable:$true] %s16
      %19 = dma.hbm_to_vmem [thread:$0]  %s0, 64, %s17, [#allocation3]
    $region5: #{tpu_custom_call.1} parent=1 // pred_fallthru
      _
    // Predicated region
    $region6: #{tpu_custom_call.1} parent=1 // pred_check
      _
    $region7: #{tpu_custom_call.1} parent=1 // pred_check_branch
      %21 = sbr.rel (0) target = $region9
    $region8: #{tpu_custom_call.1} parent=1 // pred_region
      %s23 = ssub.s32 32, 32
      %24 = vsyncadd [#allocation6], %s23
      %s26 = sshll.u32 [#allocation5], 4
      %s27 = int_to_ptr.vmem [resolvable:$true] %s26
      %29 = dma.hbm_to_vmem [thread:$0]  %s1, 32, %s27, [#allocation6]
    $region9: #{tpu_custom_call.1} parent=1 // pred_fallthru
      _
    // Predicated region
    $region10: #{tpu_custom_call.1} parent=1 // pred_check
      _
    $region11: #{tpu_custom_call.1} parent=1 // pred_check_branch
      %31 = sbr.rel (0) target = $region13
    $region12: #{tpu_custom_call.1} parent=1 // pred_region
      %32 = dma.done [#allocation3], 64
    $region13: #{tpu_custom_call.1} parent=1 // pred_fallthru
      _
    // Predicated region
    $region14: #{tpu_custom_call.1} parent=1 // pred_check
      _
    $region15: #{tpu_custom_call.1} parent=1 // pred_check_branch
      %34 = sbr.rel (0) target = $region17
    $region16: #{tpu_custom_call.1} parent=1 // pred_region
      %35 = dma.done [#allocation6], 32
    $region17: #{tpu_custom_call.1} parent=1 // pred_fallthru
      _
    %v36 = vld [vmem:[#allocation2] sm:$0xf]
    %v37 = vld [vmem:[#allocation5] sm:$0x3]
    %v39 = vlaneseq
    %v40 = vshrl.u32 %v39, 7
    %v41 = vsub.s32 0, %v40
    %v42 = vrot.slane %v37, %v41
    %v43 = vlaneseq
    %v44 = vshrl.u32 %v43, 7
    %v45 = vsub.s32 1, %v44
    %v46 = vrot.slane %v37, %v45
    %v47 = vcombine.low %v42, %v46
    %v49 = vunpack.c.l.s4 1983009808
    %v50 = vunpack.c.0.s8 %v49
    %v51 = vlaneseq
    %v52 = vshrl.u32 %v51, 7
    %v53 = vsub.s32 %v50, %v52
    %v54 = vrot.slane %v47, %v53
    %v56 = vadd.f32 %v36, %v54
    %57 = vst [vmem:[#allocation7] sm:$0xf] %v56
    // Predicated region
    $region18: #{tpu_custom_call.1} parent=1 // pred_check
      _
    $region19: #{tpu_custom_call.1} parent=1 // pred_check_branch
      %59 = sbr.rel (0) target = $region21
    $region20: #{tpu_custom_call.1} parent=1 // pred_region
      %s61 = ssub.s32 64, 64
      %62 = vsyncadd [#allocation4], %s61
      %s64 = sshll.u32 [#allocation7], 4
      %s65 = int_to_ptr.vmem [resolvable:$true] %s64
      %67 = dma.vmem_to_hbm [thread:$0]  %s65, 64, %s2, [#allocation4]
    $region21: #{tpu_custom_call.1} parent=1 // pred_fallthru
      _
    // Predicated region
    $region22: #{tpu_custom_call.1} parent=1 // pred_check
      _
    $region23: #{tpu_custom_call.1} parent=1 // pred_check_branch
      %69 = sbr.rel (0) target = $region25
    $region24: #{tpu_custom_call.1} parent=1 // pred_region
      %70 = dma.done [#allocation4], 64
    $region25: #{tpu_custom_call.1} parent=1 // pred_fallthru
      _
    %71 = vsyncpa [#allocation3], 1
    %72 = vsyncpa [#allocation6], 1
    %73 = vsyncpa [#allocation4], 1

</llo_original>
